<compile_context>
chip_gen: v6e
topology: v6e:2x2x1
jax: 0.10.0
libtpu: 0.0.40
codegen_flags: <defaults>
</compile_context>

<pallas_src>
import functools

import jax
import jax.numpy as jnp
from jax.experimental import pallas as pl
from jax.experimental.pallas import tpu as pltpu

_NEG = -1e30  # large negative instead of -inf (avoids inf-inf NaN corner cases)


def _sdcon_kernel(f1_ref, f2_ref, rowloss_ref, m_ref, l_ref, diag_ref, *,
                  temp, n_valid, blk, mm_dtype):
    """One (query-block i, key-block k) step of the tiled online-logsumexp loss.

    f1_ref, f2_ref : (T, Dp) VMEM blocks of the padded feature matrices.
    rowloss_ref    : (T, 1) per-row loss output block (written at the last key step).
    m_ref, l_ref   : (T, 1) running max / running sum-of-exp (online softmax).
    diag_ref       : (T, 1) correct-class (diagonal) logit per row.
    """
    i = pl.program_id(0)
    k = pl.program_id(1)
    nk = pl.num_programs(1)

    @pl.when(k == 0)
    def _():
        m_ref[...] = jnp.full(m_ref.shape, _NEG, jnp.float32)
        l_ref[...] = jnp.zeros(l_ref.shape, jnp.float32)
        diag_ref[...] = jnp.zeros(diag_ref.shape, jnp.float32)

    eps = jnp.float32(1e-8)
    inv_temp = jnp.float32(1.0 / temp)

    f1 = f1_ref[...].astype(jnp.float32)                  # (T, Dp)
    f2 = f2_ref[...].astype(jnp.float32)                  # (T, Dp)

    # Pre-scale: fold 1/max(||x||, eps) (and 1/temp on the key side) into the features so
    # the matmul output *is* the logits block. rsqrt goes to the otherwise-idle EUP slot.
    inv1 = jax.lax.rsqrt(jnp.maximum(jnp.sum(f1 * f1, axis=-1, keepdims=True), eps * eps))
    inv2 = jax.lax.rsqrt(jnp.maximum(jnp.sum(f2 * f2, axis=-1, keepdims=True), eps * eps)) * inv_temp
    f1s = f1 * inv1
    f2s = f2 * inv2

    # (T, T) logits block: contract the D axis of both operands (no explicit transpose).
    logits = jax.lax.dot_general(
        f1s.astype(mm_dtype), f2s.astype(mm_dtype),
        dimension_numbers=(((1,), (1,)), ((), ())),
        preferred_element_type=jnp.float32)

    # Mask padded key columns out of the softmax.
    col = jax.lax.broadcasted_iota(jnp.int32, logits.shape, 1) + k * blk
    logits = jnp.where(col < n_valid, logits, _NEG)

    # Online logsumexp update.
    m_prev = m_ref[...]
    m_new = jnp.maximum(m_prev, jnp.max(logits, axis=-1, keepdims=True))
    alpha = jnp.exp(m_prev - m_new)
    p = jnp.exp(logits - m_new)
    l_ref[...] = alpha * l_ref[...] + jnp.sum(p, axis=-1, keepdims=True)
    m_ref[...] = m_new

    # Correct-class logit: rows of this query block hit their label column only in the
    # diagonal key block (TQ == TK), and each is just a row-wise dot product.
    @pl.when(i == k)
    def _():
        diag_ref[...] = jnp.sum(f1s * f2s, axis=-1, keepdims=True)

    # Epilogue: per-row loss = logsumexp - label logit; zero out padded rows.
    @pl.when(k == nk - 1)
    def _():
        lse = m_ref[...] + jnp.log(l_ref[...])
        row = jax.lax.broadcasted_iota(jnp.int32, lse.shape, 0) + i * blk
        rowloss_ref[...] = jnp.where(row < n_valid, lse - diag_ref[...], 0.0)


def _round_up(x, m):
    return ((x + m - 1) // m) * m


def sdcon_loss(feature_1, feature_2, temp, *, tile=256):
    """feature_1: (N, 1, D), feature_2: (1, N, D) -> scalar float32 loss."""
    n = feature_1.shape[0]
    d = feature_1.shape[-1]
    assert feature_2.shape[1] == n and feature_2.shape[-1] == d
    f1 = feature_1.reshape(n, d)
    f2 = feature_2.reshape(n, d)

    # Lane-align D to 128; square, 8-aligned row/col tile (TQ == TK so the diagonal block is i==k).
    d_pad = _round_up(d, 128)
    t = min(tile, _round_up(n, 8))
    n_pad = _round_up(n, t)
    f1p = jnp.pad(f1, ((0, n_pad - n), (0, d_pad - d)))
    f2p = jnp.pad(f2, ((0, n_pad - n), (0, d_pad - d)))

    mm_dtype = jnp.bfloat16 if f1.dtype == jnp.bfloat16 else jnp.float32
    nb = n_pad // t
    kernel = functools.partial(_sdcon_kernel, temp=float(temp), n_valid=n,
                               blk=t, mm_dtype=mm_dtype)

    row_losses = pl.pallas_call(
        kernel,
        out_shape=jax.ShapeDtypeStruct((n_pad, 1), jnp.float32),
        grid_spec=pltpu.PrefetchScalarGridSpec(
            num_scalar_prefetch=0,
            grid=(nb, nb),
            in_specs=[
                pl.BlockSpec((t, d_pad), lambda i, k: (i, 0)),   # query rows
                pl.BlockSpec((t, d_pad), lambda i, k: (k, 0)),   # key rows
            ],
            out_specs=pl.BlockSpec((t, 1), lambda i, k: (i, 0)),
            scratch_shapes=[
                pltpu.VMEM((t, 1), jnp.float32),   # m: running max
                pltpu.VMEM((t, 1), jnp.float32),   # l: running sum of exp
                pltpu.VMEM((t, 1), jnp.float32),   # diag: label logits
            ],
        ),
        compiler_params=pltpu.CompilerParams(
            dimension_semantics=("parallel", "arbitrary"),
            vmem_limit_bytes=48 * 1024 * 1024,
        ),
    )(f1p, f2p)

    # Tiny epilogue: mean over the N real rows (padded rows already zeroed in-kernel).
    return jnp.sum(row_losses) / jnp.float32(n)


def _reference_loss(feature_1, feature_2, temp):
    """Pure-JAX reference mirroring the PyTorch module."""
    eps = 1e-8
    f1 = feature_1.astype(jnp.float32)
    f2 = feature_2.astype(jnp.float32)
    num = jnp.sum(f1 * f2, axis=-1)                                     # broadcast -> (N, N)
    n1 = jnp.maximum(jnp.linalg.norm(f1, axis=-1), eps)
    n2 = jnp.maximum(jnp.linalg.norm(f2, axis=-1), eps)
    logits = num / (n1 * n2) / temp
    n = logits.shape[0]
    logp = jax.nn.log_softmax(logits, axis=-1)
    return -jnp.mean(logp[jnp.arange(n), jnp.arange(n)])


if __name__ == "__main__":
    temp = 0.05
    key = jax.random.PRNGKey(0)
    k1, k2, k3, k4 = jax.random.split(key, 4)

    # Case 1: shapes from the original module usage (single block after padding).
    n, d = 8, 32
    feature_1 = jax.random.normal(k1, (n, 1, d), dtype=jnp.float32)
    feature_2 = jax.random.normal(k2, (1, n, d), dtype=jnp.float32)
    loss = jax.block_until_ready(sdcon_loss(feature_1, feature_2, temp))
    ref = jax.block_until_ready(_reference_loss(feature_1, feature_2, temp))
    assert jnp.allclose(loss, ref, rtol=1e-5, atol=1e-5), (loss, ref)

    # Case 2: exercises the multi-block grid, online logsumexp and padding masks.
    n2_, d2_ = 20, 40
    fa = jax.random.normal(k3, (n2_, 1, d2_), dtype=jnp.float32)
    fb = jax.random.normal(k4, (1, n2_, d2_), dtype=jnp.float32)
    loss2 = jax.block_until_ready(sdcon_loss(fa, fb, temp, tile=8))
    ref2 = jax.block_until_ready(_reference_loss(fa, fb, temp))
    assert jnp.allclose(loss2, ref2, rtol=1e-5, atol=1e-5), (loss2, ref2)

    print("KERNEL_OK")
</pallas_src>

<mosaic_0001>
module attributes {stable_mosaic.version = 11 : i64} {
  func.func @_sdcon_kernel(%arg0: i32, %arg1: i32, %arg2: memref<8x128xf32, #tpu.memory_space<vmem>>, %arg3: memref<8x128xf32, #tpu.memory_space<vmem>>, %arg4: memref<8x1xf32, #tpu.memory_space<vmem>>, %arg5: memref<8x1xf32, #tpu.memory_space<vmem>>, %arg6: memref<8x1xf32, #tpu.memory_space<vmem>>, %arg7: memref<8x1xf32, #tpu.memory_space<vmem>>) attributes {dimension_semantics = [#tpu.dimension_semantics<parallel>, #tpu.dimension_semantics<arbitrary>], iteration_bounds = array<i64: 1, 1>, scalar_prefetch = 0 : i64, scratch_operands = 3 : i64, tpu.core_type = #tpu.core_type<tc>, window_params = [{transform_indices = @transform_0, window_bounds = array<i64: 8, 128>}, {transform_indices = @transform_1, window_bounds = array<i64: 8, 128>}, {transform_indices = @transform_2, window_bounds = array<i64: 8, 1>}]} {
    %c0_i32 = arith.constant 0 : i32
    %0 = arith.cmpi eq, %arg1, %c0_i32 : i32
    %1 = arith.extui %0 : i1 to i32
    %c0_i32_0 = arith.constant 0 : i32
    %2 = arith.cmpi ne, %1, %c0_i32_0 : i32
    scf.if %2 {
      %cst_26 = arith.constant -1.000000e+30 : f32
      %56 = vector.broadcast %cst_26 : f32 to vector<8x1xf32>
      %c0_27 = arith.constant 0 : index
      %c0_28 = arith.constant 0 : index
      %57 = vector.load %arg5[%c0_27, %c0_28] : memref<8x1xf32, #tpu.memory_space<vmem>>, vector<8x1xf32>
      tpu.vector_store %arg5[%c0_27, %c0_28], %56 {strides = array<i32>} : memref<8x1xf32, #tpu.memory_space<vmem>>, vector<8x1xf32>,
      %cst_29 = arith.constant 0.000000e+00 : f32
      %58 = vector.broadcast %cst_29 : f32 to vector<8x1xf32>
      %c0_30 = arith.constant 0 : index
      %c0_31 = arith.constant 0 : index
      %59 = vector.load %arg6[%c0_30, %c0_31] : memref<8x1xf32, #tpu.memory_space<vmem>>, vector<8x1xf32>
      tpu.vector_store %arg6[%c0_30, %c0_31], %58 {strides = array<i32>} : memref<8x1xf32, #tpu.memory_space<vmem>>, vector<8x1xf32>,
      %cst_32 = arith.constant 0.000000e+00 : f32
      %60 = vector.broadcast %cst_32 : f32 to vector<8x1xf32>
      %c0_33 = arith.constant 0 : index
      %c0_34 = arith.constant 0 : index
      %61 = vector.load %arg7[%c0_33, %c0_34] : memref<8x1xf32, #tpu.memory_space<vmem>>, vector<8x1xf32>
      tpu.vector_store %arg7[%c0_33, %c0_34], %60 {strides = array<i32>} : memref<8x1xf32, #tpu.memory_space<vmem>>, vector<8x1xf32>,
    } else {
    }
    %c0 = arith.constant 0 : index
    %c0_1 = arith.constant 0 : index
    %3 = vector.load %arg2[%c0, %c0_1] : memref<8x128xf32, #tpu.memory_space<vmem>>, vector<8x128xf32>
    %c0_2 = arith.constant 0 : index
    %c0_3 = arith.constant 0 : index
    %4 = vector.load %arg3[%c0_2, %c0_3] : memref<8x128xf32, #tpu.memory_space<vmem>>, vector<8x128xf32>
    %5 = arith.mulf %3, %3 : vector<8x128xf32>
    %cst = arith.constant dense<0.000000e+00> : vector<8xf32>
    %6 = vector.multi_reduction <add>, %5, %cst [1] : vector<8x128xf32> to vector<8xf32>
    %7 = vector.shape_cast %6 : vector<8xf32> to vector<8x1xf32>
    %cst_4 = arith.constant 9.99999993E-9 : f32
    %cst_5 = arith.constant 9.99999993E-9 : f32
    %8 = arith.mulf %cst_4, %cst_5 : f32
    %9 = vector.broadcast %8 : f32 to vector<8x1xf32>
    %10 = arith.maximumf %7, %9 : vector<8x1xf32>
    %11 = math.rsqrt %10 : vector<8x1xf32>
    %12 = arith.mulf %4, %4 : vector<8x128xf32>
    %cst_6 = arith.constant dense<0.000000e+00> : vector<8xf32>
    %13 = vector.multi_reduction <add>, %12, %cst_6 [1] : vector<8x128xf32> to vector<8xf32>
    %14 = vector.shape_cast %13 : vector<8xf32> to vector<8x1xf32>
    %cst_7 = arith.constant 9.99999993E-9 : f32
    %cst_8 = arith.constant 9.99999993E-9 : f32
    %15 = arith.mulf %cst_7, %cst_8 : f32
    %16 = vector.broadcast %15 : f32 to vector<8x1xf32>
    %17 = arith.maximumf %14, %16 : vector<8x1xf32>
    %18 = math.rsqrt %17 : vector<8x1xf32>
    %cst_9 = arith.constant 2.000000e+01 : f32
    %19 = vector.broadcast %cst_9 : f32 to vector<8x1xf32>
    %20 = arith.mulf %18, %19 : vector<8x1xf32>
    %21 = vector.broadcast %11 : vector<8x1xf32> to vector<8x128xf32>
    %22 = arith.mulf %3, %21 : vector<8x128xf32>
    %23 = vector.broadcast %20 : vector<8x1xf32> to vector<8x128xf32>
    %24 = arith.mulf %4, %23 : vector<8x128xf32>
    %cst_10 = arith.constant dense<0.000000e+00> : vector<8x8xf32>
    %25 = tpu.matmul %22, %24, %cst_10 {dimension_numbers = #tpu.dot_dimension_numbers<[1], [1], [0], [0], [0, 0, 1, 0], [], []>} : vector<8x128xf32>, vector<8x128xf32>, vector<8x8xf32> -> vector<8x8xf32>
    %26 = tpu.iota {dimensions = array<i32: 1>} : vector<8x8xi32>
    %c8_i32 = arith.constant 8 : i32
    %27 = arith.muli %arg1, %c8_i32 : i32
    %28 = vector.broadcast %27 : i32 to vector<8x8xi32>
    %29 = arith.addi %26, %28 : vector<8x8xi32>
    %c8_i32_11 = arith.constant 8 : i32
    %30 = vector.broadcast %c8_i32_11 : i32 to vector<8x8xi32>
    %31 = arith.cmpi slt, %29, %30 : vector<8x8xi32>
    %cst_12 = arith.constant -1.000000e+30 : f32
    %32 = vector.broadcast %cst_12 : f32 to vector<8x8xf32>
    %33 = arith.select %31, %25, %32 : vector<8x8xi1>, vector<8x8xf32>
    %c0_13 = arith.constant 0 : index
    %c0_14 = arith.constant 0 : index
    %34 = vector.load %arg5[%c0_13, %c0_14] : memref<8x1xf32, #tpu.memory_space<vmem>>, vector<8x1xf32>
    %cst_15 = arith.constant dense<0xFF800000> : vector<8xf32>
    %35 = vector.multi_reduction <maximumf>, %33, %cst_15 [1] : vector<8x8xf32> to vector<8xf32>
    %36 = vector.shape_cast %35 : vector<8xf32> to vector<8x1xf32>
    %37 = arith.maximumf %34, %36 : vector<8x1xf32>
    %38 = arith.subf %34, %37 : vector<8x1xf32>
    %39 = math.exp %38 : vector<8x1xf32>
    %40 = vector.broadcast %37 : vector<8x1xf32> to vector<8x8xf32>
    %41 = arith.subf %33, %40 : vector<8x8xf32>
    %42 = math.exp %41 : vector<8x8xf32>
    %c0_16 = arith.constant 0 : index
    %c0_17 = arith.constant 0 : index
    %43 = vector.load %arg6[%c0_16, %c0_17] : memref<8x1xf32, #tpu.memory_space<vmem>>, vector<8x1xf32>
    %44 = arith.mulf %39, %43 : vector<8x1xf32>
    %cst_18 = arith.constant dense<0.000000e+00> : vector<8xf32>
    %45 = vector.multi_reduction <add>, %42, %cst_18 [1] : vector<8x8xf32> to vector<8xf32>
    %46 = vector.shape_cast %45 : vector<8xf32> to vector<8x1xf32>
    %47 = arith.addf %44, %46 : vector<8x1xf32>
    %c0_19 = arith.constant 0 : index
    %c0_20 = arith.constant 0 : index
    %48 = vector.load %arg6[%c0_19, %c0_20] : memref<8x1xf32, #tpu.memory_space<vmem>>, vector<8x1xf32>
    tpu.vector_store %arg6[%c0_19, %c0_20], %47 {strides = array<i32>} : memref<8x1xf32, #tpu.memory_space<vmem>>, vector<8x1xf32>,
    %c0_21 = arith.constant 0 : index
    %c0_22 = arith.constant 0 : index
    %49 = vector.load %arg5[%c0_21, %c0_22] : memref<8x1xf32, #tpu.memory_space<vmem>>, vector<8x1xf32>
    tpu.vector_store %arg5[%c0_21, %c0_22], %37 {strides = array<i32>} : memref<8x1xf32, #tpu.memory_space<vmem>>, vector<8x1xf32>,
    %50 = arith.cmpi eq, %arg0, %arg1 : i32
    %51 = arith.extui %50 : i1 to i32
    %c0_i32_23 = arith.constant 0 : i32
    %52 = arith.cmpi ne, %51, %c0_i32_23 : i32
    scf.if %52 {
      %56 = arith.mulf %22, %24 : vector<8x128xf32>
      %cst_26 = arith.constant dense<0.000000e+00> : vector<8xf32>
      %57 = vector.multi_reduction <add>, %56, %cst_26 [1] : vector<8x128xf32> to vector<8xf32>
      %58 = vector.shape_cast %57 : vector<8xf32> to vector<8x1xf32>
      %c0_27 = arith.constant 0 : index
      %c0_28 = arith.constant 0 : index
      %59 = vector.load %arg7[%c0_27, %c0_28] : memref<8x1xf32, #tpu.memory_space<vmem>>, vector<8x1xf32>
      tpu.vector_store %arg7[%c0_27, %c0_28], %58 {strides = array<i32>} : memref<8x1xf32, #tpu.memory_space<vmem>>, vector<8x1xf32>,
    } else {
    }
    %c0_i32_24 = arith.constant 0 : i32
    %53 = arith.cmpi eq, %arg1, %c0_i32_24 : i32
    %54 = arith.extui %53 : i1 to i32
    %c0_i32_25 = arith.constant 0 : i32
    %55 = arith.cmpi ne, %54, %c0_i32_25 : i32
    scf.if %55 {
      %c0_26 = arith.constant 0 : index
      %c0_27 = arith.constant 0 : index
      %56 = vector.load %arg5[%c0_26, %c0_27] : memref<8x1xf32, #tpu.memory_space<vmem>>, vector<8x1xf32>
      %c0_28 = arith.constant 0 : index
      %c0_29 = arith.constant 0 : index
      %57 = vector.load %arg6[%c0_28, %c0_29] : memref<8x1xf32, #tpu.memory_space<vmem>>, vector<8x1xf32>
      %58 = math.log %57 : vector<8x1xf32>
      %59 = arith.addf %56, %58 : vector<8x1xf32>
      %60 = tpu.iota {dimensions = array<i32: 0>} : vector<8x1xi32>
      %c8_i32_30 = arith.constant 8 : i32
      %61 = arith.muli %arg0, %c8_i32_30 : i32
      %62 = vector.broadcast %61 : i32 to vector<8x1xi32>
      %63 = arith.addi %60, %62 : vector<8x1xi32>
      %c8_i32_31 = arith.constant 8 : i32
      %64 = vector.broadcast %c8_i32_31 : i32 to vector<8x1xi32>
      %65 = arith.cmpi slt, %63, %64 : vector<8x1xi32>
      %c0_32 = arith.constant 0 : index
      %c0_33 = arith.constant 0 : index
      %66 = vector.load %arg7[%c0_32, %c0_33] : memref<8x1xf32, #tpu.memory_space<vmem>>, vector<8x1xf32>
      %67 = arith.subf %59, %66 : vector<8x1xf32>
      %cst_34 = arith.constant 0.000000e+00 : f32
      %68 = vector.broadcast %cst_34 : f32 to vector<8x1xf32>
      %69 = arith.select %65, %67, %68 : vector<8x1xi1>, vector<8x1xf32>
      %c0_35 = arith.constant 0 : index
      %c0_36 = arith.constant 0 : index
      %70 = vector.load %arg4[%c0_35, %c0_36] : memref<8x1xf32, #tpu.memory_space<vmem>>, vector<8x1xf32>
      tpu.vector_store %arg4[%c0_35, %c0_36], %69 {strides = array<i32>} : memref<8x1xf32, #tpu.memory_space<vmem>>, vector<8x1xf32>,
    } else {
    }
    return
  }
  func.func @transform_0(%arg0: i32, %arg1: i32) -> (i32, i32) {
    %c0_i32 = arith.constant 0 : i32
    %c0_i32_0 = arith.constant 0 : i32
    return %arg0, %c0_i32 : i32, i32
  }
  func.func @transform_1(%arg0: i32, %arg1: i32) -> (i32, i32) {
    %c0_i32 = arith.constant 0 : i32
    %c0_i32_0 = arith.constant 0 : i32
    return %arg1, %c0_i32 : i32, i32
  }
  func.func @transform_2(%arg0: i32, %arg1: i32) -> (i32, i32) {
    %c0_i32 = arith.constant 0 : i32
    %c0_i32_0 = arith.constant 0 : i32
    return %arg0, %c0_i32 : i32, i32
  }
}

</mosaic_0001>

<llo_original>
// kernel: tpu_custom_call.1
$region0: #{tpu_custom_call.1}
  #allocation0 [shape = 'u32[]', space=smem, size = 0x4, offset = 0x4, fixed_abs, tag = 'smem constant byte address 0x4 - core index']
  #allocation1 [shape = 'u32[144,128]{1,0:T(1,128)}', space=vmem, size = 0x12000, scoped, tag = 'internal scratch']
  #allocation2 [shape = 'f32[8,1]{1,0:T(8,128)}', space=vmem, size = 0x1000, scoped, tag = 'scratch operand']
  #allocation3 [shape = 'f32[8,1]{1,0:T(8,128)}', space=vmem, size = 0x1000, scoped, tag = 'scratch operand']
  #allocation4 [shape = 'f32[8,1]{1,0:T(8,128)}', space=vmem, size = 0x1000, scoped, tag = 'scratch operand']
  %s0 = inlined_call_operand.hbm [shape: f32[8,128], index: 0, kind: input, shape index: {}]
  %s1 = inlined_call_operand.hbm [shape: f32[8,128], index: 1, kind: input, shape index: {}]
  %s2 = inlined_call_operand.vmem [shape: f32[8,1], index: 2, kind: output, shape index: {}]
  %s3 = sld [smem:[#allocation0]]
  $region38: #{tpu_custom_call.1} parent=0
    _
  %s5 = ssub.s32 1, %s3
  %s6 = scalar_select 0, %s5, %s3
  $region1: #{tpu_custom_call.1} parent=0
    #allocation5 [shape = 'u8[4096]{0}', space=vmem, size = 0x1000, scoped, tag = 'input window, operand 0, single buffered']
    #allocation6 [shape = 's32[1]{0}', space=sflag, size = 0x4, scoped, tag = 'scoped memory for tpu_custom_call.1']
    #allocation7 [shape = 'u8[4096]{0}', space=vmem, size = 0x1000, scoped, tag = 'input window, operand 1, single buffered']
    #allocation8 [shape = 's32[1]{0}', space=sflag, size = 0x4, scoped, tag = 'scoped memory for tpu_custom_call.1']
    %7 = vsyncpa [#allocation6], 0
    %8 = vsyncpa [#allocation8], 0
    // Predicated region
    $region2: #{tpu_custom_call.1} parent=1 // pred_check
      _
    $region3: #{tpu_custom_call.1} parent=1 // pred_check_branch
      %10 = sbr.rel (0) target = $region5
    $region4: #{tpu_custom_call.1} parent=1 // pred_region
      %s12 = ssub.s32 128, 128
      %13 = vsyncadd [#allocation6], %s12
      %s15 = sshll.u32 [#allocation5], 4
      %s16 = int_to_ptr.vmem [resolvable:$true] %s15
      %18 = dma.hbm_to_vmem [thread:$0]  %s0, 128, %s16, [#allocation6]
    $region5: #{tpu_custom_call.1} parent=1 // pred_fallthru
      _
    // Predicated region
    $region6: #{tpu_custom_call.1} parent=1 // pred_check
      _
    $region7: #{tpu_custom_call.1} parent=1 // pred_check_branch
      %20 = sbr.rel (0) target = $region9
    $region8: #{tpu_custom_call.1} parent=1 // pred_region
      %s22 = ssub.s32 128, 128
      %23 = vsyncadd [#allocation8], %s22
      %s25 = sshll.u32 [#allocation7], 4
      %s26 = int_to_ptr.vmem [resolvable:$true] %s25
      %28 = dma.hbm_to_vmem [thread:$0]  %s1, 128, %s26, [#allocation8]
    $region9: #{tpu_custom_call.1} parent=1 // pred_fallthru
      _
    // Predicated region
    $region10: #{tpu_custom_call.1} parent=1 // pred_check
      _
    $region11: #{tpu_custom_call.1} parent=1 // pred_check_branch
      %30 = sbr.rel (0) target = $region13
    $region12: #{tpu_custom_call.1} parent=1 // pred_region
      %31 = dma.done [#allocation6], 128
    $region13: #{tpu_custom_call.1} parent=1 // pred_fallthru
      _
    // Predicated region
    $region14: #{tpu_custom_call.1} parent=1 // pred_check
      _
    $region15: #{tpu_custom_call.1} parent=1 // pred_check_branch
      %33 = sbr.rel (0) target = $region17
    $region16: #{tpu_custom_call.1} parent=1 // pred_region
      %34 = dma.done [#allocation8], 128
    $region17: #{tpu_custom_call.1} parent=1 // pred_fallthru
      _
    %p35 = scmp.eq.s32.totalorder 0, 0
    // Predicated region
    $region18: #{tpu_custom_call.1} parent=1 // pred_check
      %p36 = pneg %p35
    $region19: #{tpu_custom_call.1} parent=1 // pred_check_branch
      %38 = sbr.rel (%p36) target = $region21
    $region20: #{tpu_custom_call.1} parent=1 // pred_region
      %vm39 = vcmask 7168
      %40 = vst.msk [vmem:[#allocation2] sm:$0xff] %vm39, -1e+30
      %41 = vst.msk [vmem:[#allocation3] sm:$0xff] %vm39, 0.0
      %42 = vst.msk [vmem:[#allocation4] sm:$0xff] %vm39, 0.0
    $region21: #{tpu_custom_call.1} parent=1 // pred_fallthru
      _
    %v43 = vld [vmem:[#allocation5] sm:$0xff]
    %v44 = vld [vmem:[#allocation7] sm:$0xff]
    %v45 = vmul.f32 %v43, %v43
    %46 = vadd.xlane.f32.xlu0 %v45
    %v47 = vpop.xlane.xlu0 %46
    %v48 = vmax.f32 %v47, 1e-16
    %v49 = vrsqrt.pop %v48
    %v50 = vmul.f32 %v44, %v44
    %51 = vadd.xlane.f32.xlu0 %v50
    %v52 = vpop.xlane.xlu0 %51
    %v53 = vmax.f32 %v52, 1e-16
    %v54 = vrsqrt.pop %v53
    %v55 = vmul.f32 %v54, 20.0
    %v56 = vmul.f32 %v43, %v49
    %v57 = vmul.f32 %v44, %v55
    %58 = vmatprep.subr.mxu0 0.0
    %59 = vmatpush1.xpose.msra.mxu0 0.0
    %60 = vmatprep.subr.mxu0 0.0
    %61 = vmatpush1.xpose.msra.mxu0 0.0
    %62 = vmatprep.subr.mxu0 0.0
    %63 = vmatpush1.xpose.msra.mxu0 0.0
    %64 = vmatprep.subr.mxu0 0.0
    %65 = vmatpush1.xpose.msra.mxu0 0.0
    %66 = vmatprep.subr.mxu0 0.0
    %67 = vmatpush1.xpose.msra.mxu0 0.0
    %68 = vmatprep.subr.mxu0 0.0
    %69 = vmatpush1.xpose.msra.mxu0 0.0
    %70 = vmatprep.subr.mxu0 0.0
    %71 = vmatpush1.xpose.msra.mxu0 0.0
    %72 = vmatprep.subr.mxu0 0.0
    %73 = vmatpush1.xpose.msra.mxu0 0.0
    %74 = vmatprep.subr.mxu0 0.0
    %75 = vmatpush1.xpose.msra.mxu0 0.0
    %76 = vmatprep.subr.mxu0 0.0
    %77 = vmatpush1.xpose.msra.mxu0 0.0
    %78 = vmatprep.subr.mxu0 0.0
    %79 = vmatpush1.xpose.msra.mxu0 0.0
    %80 = vmatprep.subr.mxu0 0.0
    %81 = vmatpush1.xpose.msra.mxu0 0.0
    %82 = vmatprep.subr.mxu0 0.0
    %83 = vmatpush1.xpose.msra.mxu0 0.0
    %84 = vmatprep.subr.mxu0 0.0
    %85 = vmatpush1.xpose.msra.mxu0 0.0
    %86 = vmatprep.subr.mxu0 0.0
    %87 = vmatpush1.xpose.msra.mxu0 0.0
    %88 = vmatprep.subr.mxu0 0.0
    %89 = vmatpush1.xpose.msra.mxu0 %v57
    %90 = vmatprep.subr.mxu0 0.0
    %91 = vmatpush2.xpose.msra.mxu0 0.0
    %92 = vmatprep.subr.mxu0 0.0
    %93 = vmatpush2.xpose.msra.mxu0 0.0
    %94 = vmatprep.subr.mxu0 0.0
    %95 = vmatpush2.xpose.msra.mxu0 0.0
    %96 = vmatprep.subr.mxu0 0.0
    %97 = vmatpush2.xpose.msra.mxu0 0.0
    %98 = vmatprep.subr.mxu0 0.0
    %99 = vmatpush2.xpose.msra.mxu0 0.0
    %100 = vmatprep.subr.mxu0 0.0
    %101 = vmatpush2.xpose.msra.mxu0 0.0
    %102 = vmatprep.subr.mxu0 0.0
    %103 = vmatpush2.xpose.msra.mxu0 0.0
    %104 = vmatprep.subr.mxu0 0.0
    %105 = vmatpush2.xpose.msra.mxu0 0.0
    %106 = vmatprep.subr.mxu0 0.0
    %107 = vmatpush2.xpose.msra.mxu0 0.0
    %108 = vmatprep.subr.mxu0 0.0
    %109 = vmatpush2.xpose.msra.mxu0 0.0
    %110 = vmatprep.subr.mxu0 0.0
    %111 = vmatpush2.xpose.msra.mxu0 0.0
    %112 = vmatprep.subr.mxu0 0.0
    %113 = vmatpush2.xpose.msra.mxu0 0.0
    %114 = vmatprep.subr.mxu0 0.0
    %115 = vmatpush2.xpose.msra.mxu0 0.0
    %116 = vmatprep.subr.mxu0 0.0
    %117 = vmatpush2.xpose.msra.mxu0 0.0
    %118 = vmatprep.subr.mxu0 0.0
    %119 = vmatpush2.xpose.msra.mxu0 0.0
    %120 = vmatprep.subr.mxu0 0.0
    %121 = vmatpush2.xpose.msra.mxu0 0.0
    %122 = vmatprep.mubr.f32.mxu0 0.0
    %123 = vmatmul.mubr.f32.gmra.mxu0 %v56
    %v124 = vpop.f32.mrf.mxu0
    %v125 = vadd.f32 0.0, %v124
    %v126 = vpop.f32.mrf.mxu0
    %127 = vdwg.mxu0
    %v128 = vlaneseq
    %v129 = vand.u32 %v128, 127
    %s130 = smul.u32 0, 8
    %v131 = vstv %s130
    %v132 = vadd.s32 %v129, %v131
    %vm133 = vcmp.lt.s32.totalorder %v132, 8
    %v134 = vsel %vm133, %v125, -1e+30
    %v135 = vld [vmem:[#allocation2] sm:$0xff]
    %vm136 = vcmask 64512
    %v137 = vsel %vm136, %v134, -inf
    %138 = vmax.xlane.f32.xlu0 %v137
    %v139 = vpop.xlane.xlu0 %138
    %v140 = vmax.f32 %v135, %v139
    %v141 = vsub.f32 %v135, %v140
    %v142 = vmul.f32 %v141, 1.442695
    %v143 = vpow.pop %v142
    %145 = vset.pattern.permute.xlu0 0
    %146 = vperm.xlu0 %145, %v140
    %v147 = vpop.permute.xlu0 %146
    %v149 = vsub.f32 %v134, %v147
    %v150 = vmul.f32 %v149, 1.442695
    %v151 = vpow.pop %v150
    %v152 = vld [vmem:[#allocation3] sm:$0xff]
    %v153 = vmul.f32 %v143, %v152
    %v154 = vsel %vm136, %v151, 0.0
    %155 = vadd.xlane.f32.xlu0 %v154
    %v156 = vpop.xlane.xlu0 %155
    %v157 = vadd.f32 %v153, %v156
    %vm158 = vcmask 7168
    %159 = vst.msk [vmem:[#allocation3] sm:$0xff] %vm158, %v157
    %160 = vst.msk [vmem:[#allocation2] sm:$0xff] %vm158, %v140
    %p161 = scmp.eq.s32.totalorder 0, 0
    // Predicated region
    $region22: #{tpu_custom_call.1} parent=1 // pred_check
      %p162 = pneg %p161
    $region23: #{tpu_custom_call.1} parent=1 // pred_check_branch
      %164 = sbr.rel (%p162) target = $region25
    $region24: #{tpu_custom_call.1} parent=1 // pred_region
      %v165 = vmul.f32 %v56, %v57
      %166 = vadd.xlane.f32.xlu0 %v165
      %v167 = vpop.xlane.xlu0 %166
      %168 = vst.msk [vmem:[#allocation4] sm:$0xff] %vm158, %v167
    $region25: #{tpu_custom_call.1} parent=1 // pred_fallthru
      _
    // Predicated region
    $region26: #{tpu_custom_call.1} parent=1 // pred_check
      %p169 = pneg %p35
    $region27: #{tpu_custom_call.1} parent=1 // pred_check_branch
      %171 = sbr.rel (%p169) target = $region29
    $region28: #{tpu_custom_call.1} parent=1 // pred_region
      %v172 = vld [vmem:[#allocation2] sm:$0xff]
      %v173 = vld [vmem:[#allocation3] sm:$0xff]
      %v174 = vlog2.pop %v173
      %v175 = vmul.f32 %v174, 0.6931472
      %v176 = vadd.f32 %v172, %v175
      %v177 = vlaneseq
      %v178 = vshrl.u32 %v177, 7
      %s179 = smul.u32 0, 8
      %v180 = vstv %s179
      %v181 = vadd.s32 %v178, %v180
      %vm182 = vcmp.lt.s32.totalorder %v181, 8
      %v183 = vld [vmem:[#allocation4] sm:$0xff]
      %v184 = vsub.f32 %v176, %v183
      %v185 = vsel %vm182, %v184, 0.0
      %186 = vst.msk [vmem:[%s2] sm:$0xff] %vm158, %v185
    $region29: #{tpu_custom_call.1} parent=1 // pred_fallthru
      _
    // Predicated region
    $region30: #{tpu_custom_call.1} parent=1 // pred_check
      _
    $region31: #{tpu_custom_call.1} parent=1 // pred_check_branch
      %188 = sbr.rel (0) target = $region33
    $region32: #{tpu_custom_call.1} parent=1 // pred_region
      _
    $region33: #{tpu_custom_call.1} parent=1 // pred_fallthru
      _
    // Predicated region
    $region34: #{tpu_custom_call.1} parent=1 // pred_check
      _
    $region35: #{tpu_custom_call.1} parent=1 // pred_check_branch
      %190 = sbr.rel (0) target = $region37
    $region36: #{tpu_custom_call.1} parent=1 // pred_region
      _
    $region37: #{tpu_custom_call.1} parent=1 // pred_fallthru
      _
    %191 = vsyncpa [#allocation6], 1
    %192 = vsyncpa [#allocation8], 1

</llo_original>
